<compile_context>
chip_gen: v7x
topology: tpu7x:2x2x1
jax: 0.10.0
libtpu: 0.0.40
codegen_flags: <defaults>
</compile_context>

<pallas_src>
import jax
import jax.numpy as jnp
from jax.experimental import pallas as pl
from jax.experimental.pallas import tpu as pltpu

# ---- module hyper-parameters ----
D_MODEL = 32
VOCAB = 128          # lane-dense output (multiple of 128)
BATCH = 2
SEQ = 8


def generator_kernel(x_ref, w_ref, b_ref, o_ref):
    # x_ref: (R, D) f32   w_ref: (D, V) bf16   b_ref: (R, V) f32   o_ref: (R, V) f32
    x = x_ref[...].astype(jnp.bfloat16)            # cheap VPU cast -> native bf16 MXU
    z = jnp.dot(x, w_ref[...], preferred_element_type=jnp.float32) + b_ref[...]
    # numerically-stable log_softmax over the last (lane) axis, all f32
    m = jnp.max(z, axis=-1, keepdims=True)
    zs = z - m
    lse = jnp.log(jnp.sum(jnp.exp(zs), axis=-1, keepdims=True))
    o_ref[...] = zs - lse


@jax.jit
def generator_forward(x, w_bf16, b):
    """x: (B, S, D) f32; w_bf16: (D, V) bf16; b: (1, V) f32 -> (B, S, V) f32 log-probs."""
    B, S, D = x.shape
    V = w_bf16.shape[1]
    rows = B * S
    x2d = x.reshape(rows, D)                                   # leading-dim merge
    b_full = jnp.broadcast_to(b.astype(jnp.float32), (rows, V))  # aligned, unmasked bias tile

    out2d = pl.pallas_call(
        generator_kernel,
        out_shape=jax.ShapeDtypeStruct((rows, V), jnp.float32),
        # No grid: whole arrays live in VMEM for the single invocation; no
        # pipeline prologue/epilogue, no double-buffering.
        in_specs=[
            pl.BlockSpec(memory_space=pltpu.MemorySpace.VMEM),   # x2d
            pl.BlockSpec(memory_space=pltpu.MemorySpace.VMEM),   # W (bf16)
            pl.BlockSpec(memory_space=pltpu.MemorySpace.VMEM),   # bias slab
        ],
        out_specs=pl.BlockSpec(memory_space=pltpu.MemorySpace.VMEM),
    )(x2d, w_bf16, b_full)
    return out2d.reshape(B, S, V)


# ---------------------- parameter init (deterministic) ----------------------
def init_params(key):
    kw, kb = jax.random.split(key)
    bound = 1.0 / jnp.sqrt(jnp.float32(D_MODEL))   # nn.Linear default init range
    w = jax.random.uniform(kw, (D_MODEL, VOCAB), jnp.float32, -bound, bound)
    b = jax.random.uniform(kb, (1, VOCAB), jnp.float32, -bound, bound)
    return w.astype(jnp.bfloat16), b               # weights stored in bf16


# ---------------------- pure-JAX reference (for verification) ----------------------
def generator_reference(x, w_bf16, b):
    # Same dtype contract as the kernel: bf16 operands, f32 accumulation,
    # f32 log-softmax.  Dropout == identity (eval).
    z = jnp.dot(x.astype(jnp.bfloat16), w_bf16,
                preferred_element_type=jnp.float32) + b.astype(jnp.float32)
    return jax.nn.log_softmax(z, axis=-1)


if __name__ == "__main__":
    key = jax.random.PRNGKey(0)
    kx, kp = jax.random.split(key)

    x = jax.random.normal(kx, (BATCH, SEQ, D_MODEL), jnp.float32)
    w, b = init_params(kp)

    out = generator_forward(x, w, b)
    out = jax.block_until_ready(out)

    ref = generator_reference(x, w, b)
    assert out.shape == (BATCH, SEQ, VOCAB)
    assert jnp.allclose(out, ref, atol=1e-4, rtol=1e-4), \
        f"max abs diff {jnp.max(jnp.abs(out - ref))}"
    # log-probs must normalize: logsumexp over vocab == 0
    assert jnp.allclose(jax.scipy.special.logsumexp(out, axis=-1),
                        jnp.zeros((BATCH, SEQ)), atol=1e-4)

    print("KERNEL_OK")
</pallas_src>

<mosaic_0001>
module attributes {stable_mosaic.version = 11 : i64} {
  func.func @generator_kernel(%arg0: memref<16x32xf32, #tpu.memory_space<vmem>>, %arg1: memref<32x128xbf16, #tpu.memory_space<vmem>>, %arg2: memref<16x128xf32, #tpu.memory_space<vmem>>, %arg3: memref<16x128xf32, #tpu.memory_space<vmem>>) attributes {dimension_semantics = [], scalar_prefetch = 0 : i64, scratch_operands = 0 : i64, tpu.core_type = #tpu.core_type<tc>} {
    %c0 = arith.constant 0 : index
    %c0_0 = arith.constant 0 : index
    %0 = vector.load %arg0[%c0, %c0_0] : memref<16x32xf32, #tpu.memory_space<vmem>>, vector<16x32xf32>
    %1 = arith.truncf %0 : vector<16x32xf32> to vector<16x32xbf16>
    %c0_1 = arith.constant 0 : index
    %c0_2 = arith.constant 0 : index
    %2 = vector.load %arg1[%c0_1, %c0_2] : memref<32x128xbf16, #tpu.memory_space<vmem>>, vector<32x128xbf16>
    %cst = arith.constant dense<0.000000e+00> : vector<16x128xf32>
    %3 = tpu.matmul %1, %2, %cst {dimension_numbers = #tpu.dot_dimension_numbers<[1], [0], [0], [1], [0, 0, 1, 1], [], []>} : vector<16x32xbf16>, vector<32x128xbf16>, vector<16x128xf32> -> vector<16x128xf32>
    %c0_3 = arith.constant 0 : index
    %c0_4 = arith.constant 0 : index
    %4 = vector.load %arg2[%c0_3, %c0_4] : memref<16x128xf32, #tpu.memory_space<vmem>>, vector<16x128xf32>
    %5 = arith.addf %3, %4 : vector<16x128xf32>
    %cst_5 = arith.constant dense<0xFF800000> : vector<16xf32>
    %6 = vector.multi_reduction <maximumf>, %5, %cst_5 [1] : vector<16x128xf32> to vector<16xf32>
    %7 = vector.shape_cast %6 : vector<16xf32> to vector<16x1xf32>
    %8 = vector.broadcast %7 : vector<16x1xf32> to vector<16x128xf32>
    %9 = arith.subf %5, %8 : vector<16x128xf32>
    %10 = math.exp %9 : vector<16x128xf32>
    %cst_6 = arith.constant dense<0.000000e+00> : vector<16xf32>
    %11 = vector.multi_reduction <add>, %10, %cst_6 [1] : vector<16x128xf32> to vector<16xf32>
    %12 = vector.shape_cast %11 : vector<16xf32> to vector<16x1xf32>
    %13 = math.log %12 : vector<16x1xf32>
    %14 = vector.broadcast %13 : vector<16x1xf32> to vector<16x128xf32>
    %15 = arith.subf %9, %14 : vector<16x128xf32>
    %c0_7 = arith.constant 0 : index
    %c0_8 = arith.constant 0 : index
    %16 = vector.load %arg3[%c0_7, %c0_8] : memref<16x128xf32, #tpu.memory_space<vmem>>, vector<16x128xf32>
    tpu.vector_store %arg3[%c0_7, %c0_8], %15 {strides = array<i32>} : memref<16x128xf32, #tpu.memory_space<vmem>>, vector<16x128xf32>,
    return
  }
}

</mosaic_0001>

<llo_original>
// kernel: generator_forward.1
$region0: #{generator_forward.1}
  #allocation0 [shape = 'u32[]', space=smem, size = 0x4, offset = 0x4, fixed_abs, tag = 'smem constant byte address 0x4 - core index']
  #allocation1 [shape = 'u32[144,128]{1,0:T(1,128)}', space=vmem, size = 0x12000, scoped, tag = 'internal scratch']
  %s0 = inlined_call_operand.vmem [shape: f32[16,32], index: 0, kind: input, shape index: {}]
  %s1 = inlined_call_operand.hbm [shape: bf16[32,128], index: 1, kind: input, shape index: {}]
  %s2 = inlined_call_operand.vmem [shape: f32[16,128], index: 2, kind: input, shape index: {}]
  %s3 = inlined_call_operand.hbm [shape: f32[16,128], index: 3, kind: output, shape index: {}]
  %s4 = sld [smem:[#allocation0]]
  $region26: #{generator_forward.1} parent=0
    _
  %s6 = ssub.s32 1, %s4
  %s7 = scalar_select 0, %s6, %s4
  $region1: #{generator_forward.1} parent=0
    #allocation2 [shape = 'u8[8192]{0}', space=vmem, size = 0x2000, scoped, tag = 'input window, operand 1, single buffered']
    #allocation3 [shape = 's32[1]{0}', space=sflag, size = 0x4, scoped, tag = 'scoped memory for generator_forward.1']
    #allocation4 [shape = 's32[1]{0}', space=sflag, size = 0x4, scoped, tag = 'scoped memory for generator_forward.1']
    #allocation5 [shape = 'u8[8192]{0}', space=vmem, size = 0x2000, scoped, tag = 'output window, operand 0, single buffered']
    %8 = vsyncpa [#allocation3], 0
    %9 = vsyncpa [#allocation4], 0
    // Predicated region
    $region2: #{generator_forward.1} parent=1 // pred_check
      _
    $region3: #{generator_forward.1} parent=1 // pred_check_branch
      %11 = sbr.rel (0) target = $region5
    $region4: #{generator_forward.1} parent=1 // pred_region
      _
    $region5: #{generator_forward.1} parent=1 // pred_fallthru
      _
    // Predicated region
    $region6: #{generator_forward.1} parent=1 // pred_check
      _
    $region7: #{generator_forward.1} parent=1 // pred_check_branch
      %13 = sbr.rel (0) target = $region9
    $region8: #{generator_forward.1} parent=1 // pred_region
      %s15 = ssub.s32 256, 256
      %16 = vsyncadd [#allocation3], %s15
      %s17 = sshll.u32 [#allocation2], 4
      %s18 = int_to_ptr.vmem [resolvable:$true] %s17
      %23 = dma.hbm_to_vmem [thread:$0]  %s1, 256, %s18, [#allocation3], 64, 64, 4
    $region9: #{generator_forward.1} parent=1 // pred_fallthru
      _
    // Predicated region
    $region10: #{generator_forward.1} parent=1 // pred_check
      _
    $region11: #{generator_forward.1} parent=1 // pred_check_branch
      %25 = sbr.rel (0) target = $region13
    $region12: #{generator_forward.1} parent=1 // pred_region
      _
    $region13: #{generator_forward.1} parent=1 // pred_fallthru
      _
    // Predicated region
    $region14: #{generator_forward.1} parent=1 // pred_check
      _
    $region15: #{generator_forward.1} parent=1 // pred_check_branch
      %27 = sbr.rel (0) target = $region17
    $region16: #{generator_forward.1} parent=1 // pred_region
      %28 = dma.done [#allocation3], 256
    $region17: #{generator_forward.1} parent=1 // pred_fallthru
      _
    %v30 = vld [vmem:[%s0] sm:$0xff]
    %v31 = vld [vmem:[%s0 + $0x8] sm:$0xff]
    %v32 = vpack.c.bf16 %v31, %v30
    %v33 = vld [vmem:[#allocation2] sm:$0xf]
    %v34 = vld [vmem:[#allocation2 + $0x4] sm:$0xf]
    %v35 = vld [vmem:[#allocation2 + $0x8] sm:$0xf]
    %v36 = vld [vmem:[#allocation2 + $0xc] sm:$0xf]
    %v37 = vld [vmem:[%s2] sm:$0xff]
    %v38 = vld [vmem:[%s2 + $0x8] sm:$0xff]
    %v43 = vunpack.c.l.b16 %v33
    %v44 = vunpack.c.l.b16 %v34
    %v45 = vunpack.c.l.b16 %v35
    %v46 = vunpack.c.l.b16 %v36
    %v47 = vpack.c.b16 %v44, %v43
    %v48 = vpack.c.b16 %v46, %v45
    %vm51 = vcmask 261120
    %v53 = vsel %vm51, %v32, 0
    %55 = vmatprep.subr.bf16.mxu0 0
    %56 = vmatpush1.bf16.msra.mxu0 %v47
    %57 = vmatprep.subr.bf16.mxu0 0
    %58 = vmatpush1.bf16.msra.mxu0 %v48
    %59 = vmatprep.subr.bf16.mxu0 0
    %60 = vmatpush1.bf16.msra.mxu0 0
    %61 = vmatprep.subr.bf16.mxu0 0
    %62 = vmatpush1.bf16.msra.mxu0 0
    %63 = vmatprep.subr.bf16.mxu0 0
    %64 = vmatpush1.bf16.msra.mxu0 0
    %65 = vmatprep.subr.bf16.mxu0 0
    %66 = vmatpush1.bf16.msra.mxu0 0
    %67 = vmatprep.subr.bf16.mxu0 0
    %68 = vmatpush1.bf16.msra.mxu0 0
    %69 = vmatprep.subr.bf16.mxu0 0
    %70 = vmatpush1.bf16.msra.mxu0 0
    %71 = vmatprep.subr.bf16.mxu0 0
    %72 = vmatpush1.bf16.msra.mxu0 0
    %73 = vmatprep.subr.bf16.mxu0 0
    %74 = vmatpush1.bf16.msra.mxu0 0
    %75 = vmatprep.subr.bf16.mxu0 0
    %76 = vmatpush1.bf16.msra.mxu0 0
    %77 = vmatprep.subr.bf16.mxu0 0
    %78 = vmatpush1.bf16.msra.mxu0 0
    %79 = vmatprep.subr.bf16.mxu0 0
    %80 = vmatpush1.bf16.msra.mxu0 0
    %81 = vmatprep.subr.bf16.mxu0 0
    %82 = vmatpush1.bf16.msra.mxu0 0
    %83 = vmatprep.subr.bf16.mxu0 0
    %84 = vmatpush1.bf16.msra.mxu0 0
    %85 = vmatprep.subr.bf16.mxu0 0
    %86 = vmatpush1.bf16.msra.mxu0 0
    %87 = vmatprep.mubr.bf16.mxu0 0
    %88 = vmatmul.mubr.bf16.gmra.mrb[0].mxu0 %v53
    %v89 = vpop.f32.mrb[0].mxu0
    %v90 = vadd.f32 %v37, %v89
    %v91 = vpop.f32.mrb[0].mxu0
    %v92 = vpop.f32.mrb[0].mxu0
    %v93 = vadd.f32 %v38, %v92
    %v94 = vpop.f32.mrb[0].mxu0
    %95 = vdwg.mxu0
    %96 = vmax.xlane.f32.xlu0 %v90
    %v97 = vpop.xlane.xlu0 %96
    %98 = vmax.xlane.f32.xlu0 %v93
    %v99 = vpop.xlane.xlu0 %98
    %v100 = vsub.f32 %v90, %v97
    %v101 = vsub.f32 %v93, %v99
    %v102 = vmul.f32 %v100, 1.442695
    %v103 = vpow.pop %v102
    %v104 = vmul.f32 %v101, 1.442695
    %v105 = vpow.pop %v104
    %106 = vadd.xlane.f32.xlu0 %v103
    %v107 = vpop.xlane.xlu0 %106
    %108 = vadd.xlane.f32.xlu0 %v105
    %v109 = vpop.xlane.xlu0 %108
    %v110 = vlog2.pop %v107
    %v111 = vmul.f32 %v110, 0.6931472
    %v112 = vlog2.pop %v109
    %v113 = vmul.f32 %v112, 0.6931472
    %v114 = vsub.f32 %v100, %v111
    %v115 = vsub.f32 %v101, %v113
    %116 = vst [vmem:[#allocation5] sm:$0xff] %v114
    %117 = vst [vmem:[#allocation5 + $0x8] sm:$0xff] %v115
    // Predicated region
    $region18: #{generator_forward.1} parent=1 // pred_check
      _
    $region19: #{generator_forward.1} parent=1 // pred_check_branch
      %119 = sbr.rel (0) target = $region21
    $region20: #{generator_forward.1} parent=1 // pred_region
      %s121 = ssub.s32 256, 256
      %122 = vsyncadd [#allocation4], %s121
      %s123 = sshll.u32 [#allocation5], 4
      %s124 = int_to_ptr.vmem [resolvable:$true] %s123
      %129 = dma.vmem_to_hbm [thread:$0]  %s124, 256, %s3, [#allocation4], 128, 128, 8
    $region21: #{generator_forward.1} parent=1 // pred_fallthru
      _
    // Predicated region
    $region22: #{generator_forward.1} parent=1 // pred_check
      _
    $region23: #{generator_forward.1} parent=1 // pred_check_branch
      %131 = sbr.rel (0) target = $region25
    $region24: #{generator_forward.1} parent=1 // pred_region
      %132 = dma.done [#allocation4], 256
    $region25: #{generator_forward.1} parent=1 // pred_fallthru
      _
    %133 = vsyncpa [#allocation3], 1
    %134 = vsyncpa [#allocation4], 1

</llo_original>
